<compile_context>
chip_gen: v7x
topology: tpu7x:2x2x1
jax: 0.10.0
libtpu: 0.0.40
codegen_flags: <defaults>
</compile_context>

<pallas_src>
import functools

import jax
import jax.numpy as jnp
from jax.experimental import pallas as pl
from jax.experimental.pallas import tpu as pltpu

LANE = 128   # TPU lane width (last dim)
SUB = 8      # sublane granularity (second-to-last dim, f32)


def _round_up(x, m):
    return (x + m - 1) // m * m


def _cdiv(a, b):
    return -(-a // b)


def _make_qnet_kernel(action_size):
    """Kernel over one batch tile.
    Refs: x (tb, S) bf16, w1 (S, w_pad) bf16, w2/w3 (w_pad, w_pad) bf16,
          bias (8, w_pad) f32 (row0=b1, row1=b2, row2=b3), out (tb, A) f32."""

    def kernel(x_ref, w1_ref, w2_ref, w3_ref, b_ref, out_ref):
        x = x_ref[...]                         # bf16, true width S
        b = b_ref[...]                         # f32 (8, w_pad)
        b1 = b[0:1, :]
        b2 = b[1:2, :]
        b3 = b[2:3, :]

        # fc1 + ReLU (bf16 MXU operands, f32 accumulation)
        h1 = jnp.dot(x, w1_ref[...], preferred_element_type=jnp.float32) + b1
        h1 = jnp.maximum(h1, 0.0)
        # fc2 + ReLU
        h2 = jnp.dot(h1.astype(jnp.bfloat16), w2_ref[...],
                     preferred_element_type=jnp.float32) + b2
        h2 = jnp.maximum(h2, 0.0)
        # fc3 (no activation); store only the true action_size columns.
        out = jnp.dot(h2.astype(jnp.bfloat16), w3_ref[...],
                      preferred_element_type=jnp.float32) + b3
        out_ref[...] = out[:, :action_size].astype(out_ref.dtype)

    return kernel


def pack_qnet_params(params):
    """Pad weights to the 128-lane width, cast to bf16, keep biases f32.
    Call ONCE (at init / after each param update), not per forward call."""
    w1, b1 = params["w1"], params["b1"]
    w2, b2 = params["w2"], params["b2"]
    w3, b3 = params["w3"], params["b3"]
    S, H = w1.shape
    A = w3.shape[1]
    w_pad = max(_round_up(H, LANE), _round_up(A, LANE), LANE)

    def pad2d(a, rows, cols):
        return jnp.pad(a, ((0, rows - a.shape[0]), (0, cols - a.shape[1])))

    w1p = pad2d(w1, S, w_pad).astype(jnp.bfloat16)        # (S, w_pad)
    w2p = pad2d(w2, w_pad, w_pad).astype(jnp.bfloat16)    # (w_pad, w_pad)
    w3p = pad2d(w3, w_pad, w_pad).astype(jnp.bfloat16)    # (w_pad, w_pad)
    bias = jnp.zeros((SUB, w_pad), jnp.float32)
    bias = bias.at[0, :H].set(b1.reshape(-1))
    bias = bias.at[1, :H].set(b2.reshape(-1))
    bias = bias.at[2, :A].set(b3.reshape(-1))
    return {"w1": w1p, "w2": w2p, "w3": w3p, "bias": bias}


@functools.partial(jax.jit, static_argnames=("action_size", "tile_b"))
def qnet_forward(state, packed, *, action_size, tile_b=1024):
    """state: (B, state_size) f32. packed: output of pack_qnet_params.
    Returns (B, action_size) f32."""
    B, S = state.shape
    A = action_size

    # Batch tiling: pad minimally to the sublane granularity, then pick a tile
    # that divides the padded batch evenly. Use >=2 grid steps when possible so
    # both v7x TensorCores get work (grid axis is marked "parallel").
    b_min = max(_round_up(B, SUB), SUB)
    n_tiles = _cdiv(b_min, tile_b)
    if b_min >= 2 * SUB:
        n_tiles = max(n_tiles, 2)
    tb = _round_up(_cdiv(b_min, n_tiles), SUB)
    b_pad = tb * n_tiles

    # True-width bf16 input; only the batch dim is (cheaply) zero-padded.
    x = state.astype(jnp.bfloat16)
    if b_pad != B:
        x = jnp.pad(x, ((0, b_pad - B), (0, 0)))

    kernel = _make_qnet_kernel(A)
    out = pl.pallas_call(
        kernel,
        out_shape=jax.ShapeDtypeStruct((b_pad, A), jnp.float32),
        grid=(n_tiles,),
        in_specs=[
            pl.BlockSpec((tb, S), lambda i: (i, 0)),              # activations: tiled
            pl.BlockSpec(packed["w1"].shape, lambda i: (0, 0)),   # params: VMEM-resident
            pl.BlockSpec(packed["w2"].shape, lambda i: (0, 0)),
            pl.BlockSpec(packed["w3"].shape, lambda i: (0, 0)),
            pl.BlockSpec(packed["bias"].shape, lambda i: (0, 0)),
        ],
        out_specs=pl.BlockSpec((tb, A), lambda i: (i, 0)),        # narrow writeback
        compiler_params=pltpu.CompilerParams(
            dimension_semantics=("parallel",),
        ),
    )(x, packed["w1"], packed["w2"], packed["w3"], packed["bias"])

    return out[:B]


def init_qnet_params(key, state_size, action_size, num_neurons):
    """PyTorch nn.Linear default init: U(-1/sqrt(fan_in), 1/sqrt(fan_in))."""
    def linear(k, fan_in, fan_out):
        kw, kb = jax.random.split(k)
        bound = 1.0 / jnp.sqrt(jnp.float32(fan_in))
        w = jax.random.uniform(kw, (fan_in, fan_out), jnp.float32, -bound, bound)
        b = jax.random.uniform(kb, (1, fan_out), jnp.float32, -bound, bound)
        return w, b

    k1, k2, k3 = jax.random.split(key, 3)
    w1, b1 = linear(k1, state_size, num_neurons)
    w2, b2 = linear(k2, num_neurons, num_neurons)
    w3, b3 = linear(k3, num_neurons, action_size)
    return {"w1": w1, "b1": b1, "w2": w2, "b2": b2, "w3": w3, "b3": b3}


if __name__ == "__main__":
    key = jax.random.PRNGKey(0)
    k_params, k_state = jax.random.split(key)

    # Small shapes consistent with the module; batch chosen so the run
    # exercises batch padding, an even multi-tile grid, and the [:B] slice.
    batch = 20
    state_size = 8
    action_size = 4
    num_neurons = 32

    params = init_qnet_params(k_params, state_size, action_size, num_neurons)
    packed = pack_qnet_params(params)          # packed once, reused per call
    state = jax.random.normal(k_state, (batch, state_size), jnp.float32)

    out = qnet_forward(state, packed, action_size=action_size)
    out = jax.block_until_ready(out)
    assert out.shape == (batch, action_size)

    # Reference mirroring the kernel's numerics (bf16 matmul operands,
    # f32 accumulation, f32 biases).
    def bdot(a, b):
        return jnp.dot(a.astype(jnp.bfloat16), b.astype(jnp.bfloat16),
                       preferred_element_type=jnp.float32)

    h1 = jnp.maximum(bdot(state, params["w1"]) + params["b1"], 0.0)
    h2 = jnp.maximum(bdot(h1, params["w2"]) + params["b2"], 0.0)
    ref_bf16 = bdot(h2, params["w3"]) + params["b3"]
    assert jnp.allclose(out, ref_bf16, atol=2e-3, rtol=2e-3)

    # Also stay close to the full-f32 reference (bf16 weights -> looser tol).
    h1f = jnp.maximum(state @ params["w1"] + params["b1"], 0.0)
    h2f = jnp.maximum(h1f @ params["w2"] + params["b2"], 0.0)
    ref_f32 = h2f @ params["w3"] + params["b3"]
    assert jnp.allclose(out, ref_f32, atol=5e-2, rtol=5e-2)

    print("KERNEL_OK")
</pallas_src>

<mosaic_0001>
module attributes {stable_mosaic.version = 11 : i64} {
  func.func @kernel(%arg0: i32, %arg1: memref<16x8xbf16, #tpu.memory_space<vmem>>, %arg2: memref<8x128xbf16, #tpu.memory_space<vmem>>, %arg3: memref<128x128xbf16, #tpu.memory_space<vmem>>, %arg4: memref<128x128xbf16, #tpu.memory_space<vmem>>, %arg5: memref<8x128xf32, #tpu.memory_space<vmem>>, %arg6: memref<16x4xf32, #tpu.memory_space<vmem>>) attributes {dimension_semantics = [#tpu.dimension_semantics<parallel>], iteration_bounds = array<i64: 2>, scalar_prefetch = 0 : i64, scratch_operands = 0 : i64, tpu.core_type = #tpu.core_type<tc>, window_params = [{transform_indices = @transform_0, window_bounds = array<i64: 16, 8>}, {pipeline_mode = #tpu.pipeline_mode<synchronous>, transform_indices = @transform_1, window_bounds = array<i64: 8, 128>}, {pipeline_mode = #tpu.pipeline_mode<synchronous>, transform_indices = @transform_2, window_bounds = array<i64: 128, 128>}, {pipeline_mode = #tpu.pipeline_mode<synchronous>, transform_indices = @transform_3, window_bounds = array<i64: 128, 128>}, {pipeline_mode = #tpu.pipeline_mode<synchronous>, transform_indices = @transform_4, window_bounds = array<i64: 8, 128>}, {transform_indices = @transform_5, window_bounds = array<i64: 16, 4>}]} {
    %c0 = arith.constant 0 : index
    %c0_0 = arith.constant 0 : index
    %0 = vector.load %arg1[%c0, %c0_0] : memref<16x8xbf16, #tpu.memory_space<vmem>>, vector<16x8xbf16>
    %c0_1 = arith.constant 0 : index
    %c0_2 = arith.constant 0 : index
    %1 = vector.load %arg5[%c0_1, %c0_2] : memref<8x128xf32, #tpu.memory_space<vmem>>, vector<8x128xf32>
    %2 = vector.extract_strided_slice %1 {offsets = [0, 0], sizes = [1, 128], strides = [1, 1]} : vector<8x128xf32> to vector<1x128xf32>
    %3 = vector.extract_strided_slice %1 {offsets = [1, 0], sizes = [1, 128], strides = [1, 1]} : vector<8x128xf32> to vector<1x128xf32>
    %4 = vector.extract_strided_slice %1 {offsets = [2, 0], sizes = [1, 128], strides = [1, 1]} : vector<8x128xf32> to vector<1x128xf32>
    %c0_3 = arith.constant 0 : index
    %c0_4 = arith.constant 0 : index
    %5 = vector.load %arg2[%c0_3, %c0_4] : memref<8x128xbf16, #tpu.memory_space<vmem>>, vector<8x128xbf16>
    %cst = arith.constant dense<0.000000e+00> : vector<16x128xf32>
    %6 = tpu.matmul %0, %5, %cst {dimension_numbers = #tpu.dot_dimension_numbers<[1], [0], [0], [1], [0, 0, 1, 1], [], []>} : vector<16x8xbf16>, vector<8x128xbf16>, vector<16x128xf32> -> vector<16x128xf32>
    %7 = vector.broadcast %2 : vector<1x128xf32> to vector<16x128xf32>
    %8 = arith.addf %6, %7 : vector<16x128xf32>
    %cst_5 = arith.constant 0.000000e+00 : f32
    %9 = vector.broadcast %cst_5 : f32 to vector<16x128xf32>
    %10 = arith.maximumf %8, %9 : vector<16x128xf32>
    %11 = arith.truncf %10 : vector<16x128xf32> to vector<16x128xbf16>
    %c0_6 = arith.constant 0 : index
    %c0_7 = arith.constant 0 : index
    %12 = vector.load %arg3[%c0_6, %c0_7] : memref<128x128xbf16, #tpu.memory_space<vmem>>, vector<128x128xbf16>
    %cst_8 = arith.constant dense<0.000000e+00> : vector<16x128xf32>
    %13 = tpu.matmul %11, %12, %cst_8 {dimension_numbers = #tpu.dot_dimension_numbers<[1], [0], [0], [1], [0, 0, 1, 1], [], []>} : vector<16x128xbf16>, vector<128x128xbf16>, vector<16x128xf32> -> vector<16x128xf32>
    %14 = vector.broadcast %3 : vector<1x128xf32> to vector<16x128xf32>
    %15 = arith.addf %13, %14 : vector<16x128xf32>
    %cst_9 = arith.constant 0.000000e+00 : f32
    %16 = vector.broadcast %cst_9 : f32 to vector<16x128xf32>
    %17 = arith.maximumf %15, %16 : vector<16x128xf32>
    %18 = arith.truncf %17 : vector<16x128xf32> to vector<16x128xbf16>
    %c0_10 = arith.constant 0 : index
    %c0_11 = arith.constant 0 : index
    %19 = vector.load %arg4[%c0_10, %c0_11] : memref<128x128xbf16, #tpu.memory_space<vmem>>, vector<128x128xbf16>
    %cst_12 = arith.constant dense<0.000000e+00> : vector<16x128xf32>
    %20 = tpu.matmul %18, %19, %cst_12 {dimension_numbers = #tpu.dot_dimension_numbers<[1], [0], [0], [1], [0, 0, 1, 1], [], []>} : vector<16x128xbf16>, vector<128x128xbf16>, vector<16x128xf32> -> vector<16x128xf32>
    %21 = vector.broadcast %4 : vector<1x128xf32> to vector<16x128xf32>
    %22 = arith.addf %20, %21 : vector<16x128xf32>
    %23 = vector.extract_strided_slice %22 {offsets = [0, 0], sizes = [16, 4], strides = [1, 1]} : vector<16x128xf32> to vector<16x4xf32>
    %c0_13 = arith.constant 0 : index
    %c0_14 = arith.constant 0 : index
    %24 = vector.load %arg6[%c0_13, %c0_14] : memref<16x4xf32, #tpu.memory_space<vmem>>, vector<16x4xf32>
    tpu.vector_store %arg6[%c0_13, %c0_14], %23 {strides = array<i32>} : memref<16x4xf32, #tpu.memory_space<vmem>>, vector<16x4xf32>,
    return
  }
  func.func @transform_0(%arg0: i32) -> (i32, i32) {
    %c0_i32 = arith.constant 0 : i32
    %c0_i32_0 = arith.constant 0 : i32
    return %arg0, %c0_i32 : i32, i32
  }
  func.func @transform_1(%arg0: i32) -> (i32, i32) {
    %c0_i32 = arith.constant 0 : i32
    %c0_i32_0 = arith.constant 0 : i32
    %c0_i32_1 = arith.constant 0 : i32
    return %c0_i32, %c0_i32_0 : i32, i32
  }
  func.func @transform_2(%arg0: i32) -> (i32, i32) {
    %c0_i32 = arith.constant 0 : i32
    %c0_i32_0 = arith.constant 0 : i32
    %c0_i32_1 = arith.constant 0 : i32
    return %c0_i32, %c0_i32_0 : i32, i32
  }
  func.func @transform_3(%arg0: i32) -> (i32, i32) {
    %c0_i32 = arith.constant 0 : i32
    %c0_i32_0 = arith.constant 0 : i32
    %c0_i32_1 = arith.constant 0 : i32
    return %c0_i32, %c0_i32_0 : i32, i32
  }
  func.func @transform_4(%arg0: i32) -> (i32, i32) {
    %c0_i32 = arith.constant 0 : i32
    %c0_i32_0 = arith.constant 0 : i32
    %c0_i32_1 = arith.constant 0 : i32
    return %c0_i32, %c0_i32_0 : i32, i32
  }
  func.func @transform_5(%arg0: i32) -> (i32, i32) {
    %c0_i32 = arith.constant 0 : i32
    %c0_i32_0 = arith.constant 0 : i32
    return %arg0, %c0_i32 : i32, i32
  }
}

</mosaic_0001>

<llo_original>
// kernel: qnet_forward.1
$region0: #{qnet_forward.1}
  #allocation0 [shape = 'u32[]', space=smem, size = 0x4, offset = 0x4, fixed_abs, tag = 'smem constant byte address 0x4 - core index']
  #allocation1 [shape = 'u32[144,128]{1,0:T(1,128)}', space=vmem, size = 0x12000, scoped, tag = 'internal scratch']
  %s0 = inlined_call_operand.vmem [shape: bf16[32,8], index: 0, kind: input, shape index: {}]
  %s1 = inlined_call_operand.vmem [shape: bf16[8,128], index: 1, kind: input, shape index: {}]
  %s2 = inlined_call_operand.vmem [shape: bf16[128,128], index: 2, kind: input, shape index: {}]
  %s3 = inlined_call_operand.hbm [shape: bf16[128,128], index: 3, kind: input, shape index: {}]
  %s4 = inlined_call_operand.hbm [shape: f32[8,128], index: 4, kind: input, shape index: {}]
  %s5 = inlined_call_operand.vmem [shape: f32[32,4], index: 5, kind: output, shape index: {}]
  %s6 = sld [smem:[#allocation0]]
  $region61: #{qnet_forward.1} parent=0
    _
  %s8 = ssub.s32 1, %s6
  %s9 = scalar_select 0, %s8, %s6
  $region1: #{qnet_forward.1} parent=0
    #allocation2 [shape = 'u8[32768]{0}', space=vmem, size = 0x8000, scoped, tag = 'input window, operand 3, single buffered']
    #allocation3 [shape = 's32[2]{0}', space=sflag, size = 0x8, scoped, tag = 'scoped memory for qnet_forward.1']
    #allocation4 [shape = 'u8[4096]{0}', space=vmem, size = 0x1000, scoped, tag = 'input window, operand 4, single buffered']
    #allocation5 [shape = 's32[1]{0}', space=sflag, size = 0x4, scoped, tag = 'scoped memory for qnet_forward.1']
    %10 = vsyncpa [#allocation3], 0
    %11 = vsyncpa [#allocation5], 0
    loop: start=0, step=1, limit=4
    $region2: #{qnet_forward.1} parent=1 // loop_pre_header
      _
    $region3: #{qnet_forward.1} parent=1 // loop_header
      %s13 = sphi 0, %s17
      %p14 = scmp.ge.s32.totalorder %s13, 4
      %s23 = sphi 0, %s25
      %s26 = sphi 0, %s23
      %s27 = sphi 0, %s26
      %s43 = sphi 0, %s27
      %s47 = sphi 0, %s47
      %s49 = sphi 0, %s47
      %s50 = sphi 0, %s49
      %s64 = sphi 0, %s50
      %s68 = sphi 0, %s68
      %s70 = sphi 0, %s68
      %s71 = sphi 0, %s70
      %s85 = sphi 0, %s71
      %s89 = sphi 0, %s89
      %s91 = sphi 0, %s89
      %s92 = sphi 0, %s91
      %s106 = sphi 0, %s92
      %s110 = sphi 0, %s110
      %s112 = sphi 0, %s110
      %s113 = sphi 0, %s112
      %s127 = sphi 0, %s113
      %s133 = sphi 0, %s135
      %s136 = sphi 0, %s133
      %s137 = sphi 0, %s136
      %s153 = sphi 0, %s137
    $region4: #{qnet_forward.1} parent=1 // loop_header_branch
      %16 = sbr.rel (%p14) target = $region8
    $region5: #{qnet_forward.1} parent=1 // loop_body
      %s18 = ssub.s32 %s13, 1
      %s19 = ssub.s32 %s13, 2
      %s20 = sadd.s32 %s13, 1
      %s21 = ssub.s32 %s13, %s20
      %p22 = scmp.eq.s32.totalorder %s21, 0
      %s24 = sadd.s32 %s23, 1
      %s25 = scalar_select %p22, %s23, %s24
      %p28 = pneg %p22
      %p29 = scmp.eq.s32.totalorder %s13, 1
      %p30 = por %p28, %p29
      %p31 = scmp.ne.s32.totalorder %s23, %s26
      %p32 = scmp.eq.s32.totalorder %s13, 0
      %p33 = por %p31, %p32
      %p34 = scmp.ne.s32.totalorder %s23, %s26
      %p35 = scmp.eq.s32.totalorder %s18, 1
      %p36 = por %p34, %p35
      %p37 = scmp.ne.s32.totalorder %s26, %s27
      %p38 = scmp.eq.s32.totalorder %s18, 0
      %p39 = por %p37, %p38
      %p40 = scmp.ne.s32.totalorder %s26, %s27
      %p41 = scmp.eq.s32.totalorder %s19, 1
      %p42 = por %p40, %p41
      %p44 = scmp.ne.s32.totalorder %s27, %s43
      %p45 = scmp.eq.s32.totalorder %s19, 0
      %p46 = por %p44, %p45
      %s48 = sadd.s32 %s47, 1
      %p51 = scmp.eq.s32.totalorder %s13, 1
      %p52 = scmp.ne.s32.totalorder %s47, %s49
      %p53 = scmp.eq.s32.totalorder %s13, 0
      %p54 = por %p52, %p53
      %p55 = scmp.ne.s32.totalorder %s47, %s49
      %p56 = scmp.eq.s32.totalorder %s18, 1
      %p57 = por %p55, %p56
      %p58 = scmp.ne.s32.totalorder %s49, %s50
      %p59 = scmp.eq.s32.totalorder %s18, 0
      %p60 = por %p58, %p59
      %p61 = scmp.ne.s32.totalorder %s49, %s50
      %p62 = scmp.eq.s32.totalorder %s19, 1
      %p63 = por %p61, %p62
      %p65 = scmp.ne.s32.totalorder %s50, %s64
      %p66 = scmp.eq.s32.totalorder %s19, 0
      %p67 = por %p65, %p66
      %s69 = sadd.s32 %s68, 1
      %p72 = scmp.eq.s32.totalorder %s13, 1
      %p73 = scmp.ne.s32.totalorder %s68, %s70
      %p74 = scmp.eq.s32.totalorder %s13, 0
      %p75 = por %p73, %p74
      %p76 = scmp.ne.s32.totalorder %s68, %s70
      %p77 = scmp.eq.s32.totalorder %s18, 1
      %p78 = por %p76, %p77
      %p79 = scmp.ne.s32.totalorder %s70, %s71
      %p80 = scmp.eq.s32.totalorder %s18, 0
      %p81 = por %p79, %p80
      %p82 = scmp.ne.s32.totalorder %s70, %s71
      %p83 = scmp.eq.s32.totalorder %s19, 1
      %p84 = por %p82, %p83
      %p86 = scmp.ne.s32.totalorder %s71, %s85
      %p87 = scmp.eq.s32.totalorder %s19, 0
      %p88 = por %p86, %p87
      %s90 = sadd.s32 %s89, 1
      %p93 = scmp.eq.s32.totalorder %s13, 1
      %p94 = scmp.ne.s32.totalorder %s89, %s91
      %p95 = scmp.eq.s32.totalorder %s13, 0
      %p96 = por %p94, %p95
      %p97 = scmp.ne.s32.totalorder %s89, %s91
      %p98 = scmp.eq.s32.totalorder %s18, 1
      %p99 = por %p97, %p98
      %p100 = scmp.ne.s32.totalorder %s91, %s92
      %p101 = scmp.eq.s32.totalorder %s18, 0
      %p102 = por %p100, %p101
      %p103 = scmp.ne.s32.totalorder %s91, %s92
      %p104 = scmp.eq.s32.totalorder %s19, 1
      %p105 = por %p103, %p104
      %p107 = scmp.ne.s32.totalorder %s92, %s106
      %p108 = scmp.eq.s32.totalorder %s19, 0
      %p109 = por %p107, %p108
      %s111 = sadd.s32 %s110, 1
      %p114 = scmp.eq.s32.totalorder %s13, 1
      %p115 = scmp.ne.s32.totalorder %s110, %s112
      %p116 = scmp.eq.s32.totalorder %s13, 0
      %p117 = por %p115, %p116
      %p118 = scmp.ne.s32.totalorder %s110, %s112
      %p119 = scmp.eq.s32.totalorder %s18, 1
      %p120 = por %p118, %p119
      %p121 = scmp.ne.s32.totalorder %s112, %s113
      %p122 = scmp.eq.s32.totalorder %s18, 0
      %p123 = por %p121, %p122
      %p124 = scmp.ne.s32.totalorder %s112, %s113
      %p125 = scmp.eq.s32.totalorder %s19, 1
      %p126 = por %p124, %p125
      %p128 = scmp.ne.s32.totalorder %s113, %s127
      %p129 = scmp.eq.s32.totalorder %s19, 0
      %p130 = por %p128, %p129
      %s131 = ssub.s32 %s13, %s20
      %p132 = scmp.eq.s32.totalorder %s131, 0
      %s134 = sadd.s32 %s133, 1
      %s135 = scalar_select %p132, %s133, %s134
      %p138 = pneg %p132
      %p139 = scmp.eq.s32.totalorder %s13, 1
      %p140 = por %p138, %p139
      %p141 = scmp.ne.s32.totalorder %s133, %s136
      %p142 = scmp.eq.s32.totalorder %s13, 0
      %p143 = por %p141, %p142
      %p144 = scmp.ne.s32.totalorder %s133, %s136
      %p145 = scmp.eq.s32.totalorder %s18, 1
      %p146 = por %p144, %p145
      %p147 = scmp.ne.s32.totalorder %s136, %s137
      %p148 = scmp.eq.s32.totalorder %s18, 0
      %p149 = por %p147, %p148
      %p150 = scmp.ne.s32.totalorder %s136, %s137
      %p151 = scmp.eq.s32.totalorder %s19, 1
      %p152 = por %p150, %p151
      %p154 = scmp.ne.s32.totalorder %s137, %s153
      %p155 = scmp.eq.s32.totalorder %s19, 0
      %p156 = por %p154, %p155
      %p157 = scmp.le.s32.totalorder 1, %s13
      %p158 = scmp.lt.s32.totalorder %s13, 3
      %p159 = pnand %p157, %p158
      %p160 = pneg %p159
      // Predicated region
      $region9: #{qnet_forward.1} parent=5 // pred_check
        _
      $region10: #{qnet_forward.1} parent=5 // pred_check_branch
        %162 = sbr.rel (%p159) target = $region12
      $region11: #{qnet_forward.1} parent=5 // pred_region
        %s163 = ssub.s32 %s13, 1
        // Predicated region
        $region13: #{qnet_forward.1} parent=11 // pred_check
          %p164 = pneg %p60
        $region14: #{qnet_forward.1} parent=11 // pred_check_branch
          %166 = sbr.rel (%p164) target = $region16
        $region15: #{qnet_forward.1} parent=11 // pred_region
          _
        $region16: #{qnet_forward.1} parent=11 // pred_fallthru
          _
        // Predicated region
        $region17: #{qnet_forward.1} parent=11 // pred_check
          %p167 = pneg %p81
        $region18: #{qnet_forward.1} parent=11 // pred_check_branch
          %169 = sbr.rel (%p167) target = $region20
        $region19: #{qnet_forward.1} parent=11 // pred_region
          _
        $region20: #{qnet_forward.1} parent=11 // pred_fallthru
          _
        // Predicated region
        $region21: #{qnet_forward.1} parent=11 // pred_check
          %p170 = pneg %p102
        $region22: #{qnet_forward.1} parent=11 // pred_check_branch
          %172 = sbr.rel (%p170) target = $region24
        $region23: #{qnet_forward.1} parent=11 // pred_region
          %s174 = ssub.s32 1024, 1024
          %175 = vsyncadd [#allocation3], %s174
          %s176 = sshll.u32 [#allocation2], 4
          %s177 = int_to_ptr.vmem [resolvable:$true] %s176
          %182 = dma.hbm_to_vmem [thread:$0]  %s3, 1024, %s177, [#allocation3], 64, 64, 4
        $region24: #{qnet_forward.1} parent=11 // pred_fallthru
          _
        // Predicated region
        $region25: #{qnet_forward.1} parent=11 // pred_check
          %p183 = pneg %p123
        $region26: #{qnet_forward.1} parent=11 // pred_check_branch
          %185 = sbr.rel (%p183) target = $region28
        $region27: #{qnet_forward.1} parent=11 // pred_region
          %s187 = ssub.s32 128, 128
          %188 = vsyncadd [#allocation5], %s187
          %s190 = sshll.u32 [#allocation4], 4
          %s191 = int_to_ptr.vmem [resolvable:$true] %s190
          %193 = dma.hbm_to_vmem [thread:$0]  %s4, 128, %s191, [#allocation5]
        $region28: #{qnet_forward.1} parent=11 // pred_fallthru
          _
      $region12: #{qnet_forward.1} parent=5 // pred_fallthru
        _
      %p194 = scmp.lt.s32.totalorder %s13, 2
      // Predicated region
      $region29: #{qnet_forward.1} parent=5 // pred_check
        %p195 = pneg %p194
      $region30: #{qnet_forward.1} parent=5 // pred_check_branch
        %197 = sbr.rel (%p195) target = $region32
      $region31: #{qnet_forward.1} parent=5 // pred_region
        // Predicated region
        $region33: #{qnet_forward.1} parent=31 // pred_check
          %p198 = pneg %p33
        $region34: #{qnet_forward.1} parent=31 // pred_check_branch
          %200 = sbr.rel (%p198) target = $region36
        $region35: #{qnet_forward.1} parent=31 // pred_region
          %s201 = smul.u32 2, %s13
          %p202 = scmp.lt.s32.totalorder %s201, 3
          %s203 = scalar_select %p202, %s201, 3
          %s204 = smul.addr %s203, 4
          %s205 = scalar_lea.vmem %s0, %s204
          %s206 = smul.u32 2, %s13
        $region36: #{qnet_forward.1} parent=31 // pred_fallthru
          _
      $region32: #{qnet_forward.1} parent=5 // pred_fallthru
        _
      %p207 = scmp.le.s32.totalorder 1, %s13
      %p208 = scmp.lt.s32.totalorder %s13, 3
      %p209 = pnand %p207, %p208
      %p210 = pneg %p209
      // Predicated region
      $region37: #{qnet_forward.1} parent=5 // pred_check
        _
      $region38: #{qnet_forward.1} parent=5 // pred_check_branch
        %212 = sbr.rel (%p209) target = $region40
      $region39: #{qnet_forward.1} parent=5 // pred_region
        %s213 = ssub.s32 %s13, 1
        // Predicated region
        $region41: #{qnet_forward.1} parent=39 // pred_check
          %p214 = pneg %p102
        $region42: #{qnet_forward.1} parent=39 // pred_check_branch
          %216 = sbr.rel (%p214) target = $region44
        $region43: #{qnet_forward.1} parent=39 // pred_region
          %217 = dma.done [#allocation3], 1024
        $region44: #{qnet_forward.1} parent=39 // pred_fallthru
          _
        // Predicated region
        $region45: #{qnet_forward.1} parent=39 // pred_check
          %p218 = pneg %p123
        $region46: #{qnet_forward.1} parent=39 // pred_check_branch
          %220 = sbr.rel (%p218) target = $region48
        $region47: #{qnet_forward.1} parent=39 // pred_region
          %221 = dma.done [#allocation5], 128
        $region48: #{qnet_forward.1} parent=39 // pred_fallthru
          _
        %s222 = smul.u32 2, %s18
        %p223 = scmp.lt.s32.totalorder %s222, 3
        %s224 = scalar_select %p223, %s222, 3
        %s225 = smul.addr %s224, 4
        %s226 = scalar_lea.vmem %s0, %s225
        %p227 = pneg %p39
        %p228 = pneg %p36
        %p229 = pneg %p60
        %p230 = pneg %p57
        %p231 = pneg %p81
        %p232 = pneg %p78
        %p233 = pneg %p102
        %p234 = pneg %p99
        %p235 = pneg %p123
        %p236 = pneg %p120
        %p237 = pneg %p149
        %p238 = pneg %p146
        %s239 = smul.u32 2, %s18
        %p240 = scmp.lt.s32.totalorder %s239, 3
        %s241 = scalar_select %p240, %s239, 3
        %s242 = smul.addr %s241, 8
        %s243 = scalar_lea.vmem %s5, %s242
        %s244 = smul.u32 2, %s18
        %p245 = scmp.lt.s32.totalorder %s244, 3
        %s246 = scalar_select %p245, %s244, 3
        %s247 = smul.addr %s246, 4
        %s248 = scalar_lea.vmem %s0, %s247
        %s249 = smul.u32 2, %s18
        %s250 = smul.u32 2, %s18
        %p251 = scmp.lt.s32.totalorder %s250, 3
        %s252 = scalar_select %p251, %s250, 3
        %s253 = smul.addr %s252, 8
        %s254 = scalar_lea.vmem %s5, %s253
        %s255 = smul.u32 2, %s18
        %v257 = vld [vmem:[%s248] sm:$0xf]
        %v258 = vld [vmem:[%s248 + $0x4] sm:$0xf]
        %v259 = vld [vmem:[#allocation4] sm:$0xff]
        %v260 = vld [vmem:[%s1] sm:$0xf]
        %v261 = vlaneseq
        %v262 = vshrl.u32 %v261, 7
        %v263 = vsub.s32 0, %v262
        %v264 = vrot.slane %v259, %v263
        %v267 = vunpack.c.l.b16 %v257
        %v268 = vunpack.c.l.b16 %v258
        %v269 = vpack.c.b16 %v268, %v267
        %vm270 = vcmask 64512
        %v272 = vsel %vm270, %v269, 0
        %vm274 = vcmask 1043456
        %v276 = vsel %vm274, %v260, 0
        %278 = vmatprep.subr.bf16.mxu0 0
        %279 = vmatpush1.bf16.msra.mxu0 %v276
        %280 = vmatprep.subr.bf16.mxu0 0
        %281 = vmatpush1.bf16.msra.mxu0 0
        %282 = vmatprep.subr.bf16.mxu0 0
        %283 = vmatpush1.bf16.msra.mxu0 0
        %284 = vmatprep.subr.bf16.mxu0 0
        %285 = vmatpush1.bf16.msra.mxu0 0
        %286 = vmatprep.subr.bf16.mxu0 0
        %287 = vmatpush1.bf16.msra.mxu0 0
        %288 = vmatprep.subr.bf16.mxu0 0
        %289 = vmatpush1.bf16.msra.mxu0 0
        %290 = vmatprep.subr.bf16.mxu0 0
        %291 = vmatpush1.bf16.msra.mxu0 0
        %292 = vmatprep.subr.bf16.mxu0 0
        %293 = vmatpush1.bf16.msra.mxu0 0
        %294 = vmatprep.subr.bf16.mxu0 0
        %295 = vmatpush1.bf16.msra.mxu0 0
        %296 = vmatprep.subr.bf16.mxu0 0
        %297 = vmatpush1.bf16.msra.mxu0 0
        %298 = vmatprep.subr.bf16.mxu0 0
        %299 = vmatpush1.bf16.msra.mxu0 0
        %300 = vmatprep.subr.bf16.mxu0 0
        %301 = vmatpush1.bf16.msra.mxu0 0
        %302 = vmatprep.subr.bf16.mxu0 0
        %303 = vmatpush1.bf16.msra.mxu0 0
        %304 = vmatprep.subr.bf16.mxu0 0
        %305 = vmatpush1.bf16.msra.mxu0 0
        %306 = vmatprep.subr.bf16.mxu0 0
        %307 = vmatpush1.bf16.msra.mxu0 0
        %308 = vmatprep.subr.bf16.mxu0 0
        %309 = vmatpush1.bf16.msra.mxu0 0
        %310 = vmatprep.mubr.bf16.mxu0 0
        %311 = vmatmul.mubr.bf16.gmra.mrb[0].mxu0 %v272
        %v312 = vpop.f32.mrb[0].mxu0
        %v313 = vadd.f32 %v264, %v312
        %v314 = vpop.f32.mrb[0].mxu0
        %v315 = vpop.f32.mrb[0].mxu0
        %v316 = vadd.f32 %v264, %v315
        %v317 = vpop.f32.mrb[0].mxu0
        %318 = vdwg.mxu0
        %v319 = vmax.f32 %v313, 0.0
        %v320 = vmax.f32 %v316, 0.0
        %v321 = vpack.c.bf16 %v320, %v319
        %v322 = vld [vmem:[%s2] sm:$0xf]
        %v323 = vld [vmem:[%s2 + $0x4] sm:$0xf]
        %v324 = vld [vmem:[%s2 + $0x8] sm:$0xf]
        %v325 = vld [vmem:[%s2 + $0xc] sm:$0xf]
        %v326 = vld [vmem:[%s2 + $0x10] sm:$0xf]
        %v327 = vld [vmem:[%s2 + $0x14] sm:$0xf]
        %v328 = vld [vmem:[%s2 + $0x18] sm:$0xf]
        %v329 = vld [vmem:[%s2 + $0x1c] sm:$0xf]
        %v330 = vld [vmem:[%s2 + $0x20] sm:$0xf]
        %v331 = vld [vmem:[%s2 + $0x24] sm:$0xf]
        %v332 = vld [vmem:[%s2 + $0x28] sm:$0xf]
        %v333 = vld [vmem:[%s2 + $0x2c] sm:$0xf]
        %v334 = vld [vmem:[%s2 + $0x30] sm:$0xf]
        %v335 = vld [vmem:[%s2 + $0x34] sm:$0xf]
        %v336 = vld [vmem:[%s2 + $0x38] sm:$0xf]
        %v337 = vld [vmem:[%s2 + $0x3c] sm:$0xf]
        %v338 = vlaneseq
        %v339 = vshrl.u32 %v338, 7
        %v340 = vsub.s32 1, %v339
        %v341 = vrot.slane %v259, %v340
        %v358 = vunpack.c.l.b16 %v322
        %v359 = vunpack.c.l.b16 %v323
        %v360 = vunpack.c.l.b16 %v324
        %v361 = vunpack.c.l.b16 %v325
        %v362 = vunpack.c.l.b16 %v326
        %v363 = vunpack.c.l.b16 %v327
        %v364 = vunpack.c.l.b16 %v328
        %v365 = vunpack.c.l.b16 %v329
        %v366 = vunpack.c.l.b16 %v330
        %v367 = vunpack.c.l.b16 %v331
        %v368 = vunpack.c.l.b16 %v332
        %v369 = vunpack.c.l.b16 %v333
        %v370 = vunpack.c.l.b16 %v334
        %v371 = vunpack.c.l.b16 %v335
        %v372 = vunpack.c.l.b16 %v336
        %v373 = vunpack.c.l.b16 %v337
        %v374 = vpack.c.b16 %v359, %v358
        %v375 = vpack.c.b16 %v361, %v360
        %v376 = vpack.c.b16 %v363, %v362
        %v377 = vpack.c.b16 %v365, %v364
        %v378 = vpack.c.b16 %v367, %v366
        %v379 = vpack.c.b16 %v369, %v368
        %v380 = vpack.c.b16 %v371, %v370
        %v381 = vpack.c.b16 %v373, %v372
        %390 = vmatprep.subr.bf16.mxu0 0
        %391 = vmatpush1.bf16.msra.mxu0 %v374
        %392 = vmatprep.subr.bf16.mxu0 0
        %393 = vmatpush1.bf16.msra.mxu0 %v375
        %394 = vmatprep.subr.bf16.mxu0 0
        %395 = vmatpush1.bf16.msra.mxu0 %v376
        %396 = vmatprep.subr.bf16.mxu0 0
        %397 = vmatpush1.bf16.msra.mxu0 %v377
        %398 = vmatprep.subr.bf16.mxu0 0
        %399 = vmatpush1.bf16.msra.mxu0 %v378
        %400 = vmatprep.subr.bf16.mxu0 0
        %401 = vmatpush1.bf16.msra.mxu0 %v379
        %402 = vmatprep.subr.bf16.mxu0 0
        %403 = vmatpush1.bf16.msra.mxu0 %v380
        %404 = vmatprep.subr.bf16.mxu0 0
        %405 = vmatpush1.bf16.msra.mxu0 %v381
        %406 = vmatprep.subr.bf16.mxu0 0
        %407 = vmatpush1.bf16.msra.mxu0 0
        %408 = vmatprep.subr.bf16.mxu0 0
        %409 = vmatpush1.bf16.msra.mxu0 0
        %410 = vmatprep.subr.bf16.mxu0 0
        %411 = vmatpush1.bf16.msra.mxu0 0
        %412 = vmatprep.subr.bf16.mxu0 0
        %413 = vmatpush1.bf16.msra.mxu0 0
        %414 = vmatprep.subr.bf16.mxu0 0
        %415 = vmatpush1.bf16.msra.mxu0 0
        %416 = vmatprep.subr.bf16.mxu0 0
        %417 = vmatpush1.bf16.msra.mxu0 0
        %418 = vmatprep.subr.bf16.mxu0 0
        %419 = vmatpush1.bf16.msra.mxu0 0
        %420 = vmatprep.subr.bf16.mxu0 0
        %421 = vmatpush1.bf16.msra.mxu0 0
        %422 = vmatprep.mubr.bf16.mxu0 0
        %423 = vmatmul.mubr.bf16.gmra.mrb[0].mxu0 %v321
        %v424 = vpop.f32.mrb[0].mxu0
        %v425 = vadd.f32 %v341, %v424
        %v426 = vpop.f32.mrb[0].mxu0
        %v427 = vpop.f32.mrb[0].mxu0
        %v428 = vadd.f32 %v341, %v427
        %v429 = vpop.f32.mrb[0].mxu0
        %430 = vdwg.mxu0
        %v431 = vmax.f32 %v425, 0.0
        %v432 = vmax.f32 %v428, 0.0
        %v433 = vpack.c.bf16 %v432, %v431
        %v434 = vld [vmem:[#allocation2] sm:$0xf]
        %v435 = vld [vmem:[#allocation2 + $0x4] sm:$0xf]
        %v436 = vld [vmem:[#allocation2 + $0x8] sm:$0xf]
        %v437 = vld [vmem:[#allocation2 + $0xc] sm:$0xf]
        %v438 = vld [vmem:[#allocation2 + $0x10] sm:$0xf]
        %v439 = vld [vmem:[#allocation2 + $0x14] sm:$0xf]
        %v440 = vld [vmem:[#allocation2 + $0x18] sm:$0xf]
        %v441 = vld [vmem:[#allocation2 + $0x1c] sm:$0xf]
        %v442 = vld [vmem:[#allocation2 + $0x20] sm:$0xf]
        %v443 = vld [vmem:[#allocation2 + $0x24] sm:$0xf]
        %v444 = vld [vmem:[#allocation2 + $0x28] sm:$0xf]
        %v445 = vld [vmem:[#allocation2 + $0x2c] sm:$0xf]
        %v446 = vld [vmem:[#allocation2 + $0x30] sm:$0xf]
        %v447 = vld [vmem:[#allocation2 + $0x34] sm:$0xf]
        %v448 = vld [vmem:[#allocation2 + $0x38] sm:$0xf]
        %v449 = vld [vmem:[#allocation2 + $0x3c] sm:$0xf]
        %v450 = vlaneseq
        %v451 = vshrl.u32 %v450, 7
        %v452 = vsub.s32 2, %v451
        %v453 = vrot.slane %v259, %v452
        %v470 = vunpack.c.l.b16 %v434
        %v471 = vunpack.c.l.b16 %v435
        %v472 = vunpack.c.l.b16 %v436
        %v473 = vunpack.c.l.b16 %v437
        %v474 = vunpack.c.l.b16 %v438
        %v475 = vunpack.c.l.b16 %v439
        %v476 = vunpack.c.l.b16 %v440
        %v477 = vunpack.c.l.b16 %v441
        %v478 = vunpack.c.l.b16 %v442
        %v479 = vunpack.c.l.b16 %v443
        %v480 = vunpack.c.l.b16 %v444
        %v481 = vunpack.c.l.b16 %v445
        %v482 = vunpack.c.l.b16 %v446
        %v483 = vunpack.c.l.b16 %v447
        %v484 = vunpack.c.l.b16 %v448
        %v485 = vunpack.c.l.b16 %v449
        %v486 = vpack.c.b16 %v471, %v470
        %v487 = vpack.c.b16 %v473, %v472
        %v488 = vpack.c.b16 %v475, %v474
        %v489 = vpack.c.b16 %v477, %v476
        %v490 = vpack.c.b16 %v479, %v478
        %v491 = vpack.c.b16 %v481, %v480
        %v492 = vpack.c.b16 %v483, %v482
        %v493 = vpack.c.b16 %v485, %v484
        %502 = vmatprep.subr.bf16.mxu0 0
        %503 = vmatpush1.bf16.msra.mxu0 %v486
        %504 = vmatprep.subr.bf16.mxu0 0
        %505 = vmatpush1.bf16.msra.mxu0 %v487
        %506 = vmatprep.subr.bf16.mxu0 0
        %507 = vmatpush1.bf16.msra.mxu0 %v488
        %508 = vmatprep.subr.bf16.mxu0 0
        %509 = vmatpush1.bf16.msra.mxu0 %v489
        %510 = vmatprep.subr.bf16.mxu0 0
        %511 = vmatpush1.bf16.msra.mxu0 %v490
        %512 = vmatprep.subr.bf16.mxu0 0
        %513 = vmatpush1.bf16.msra.mxu0 %v491
        %514 = vmatprep.subr.bf16.mxu0 0
        %515 = vmatpush1.bf16.msra.mxu0 %v492
        %516 = vmatprep.subr.bf16.mxu0 0
        %517 = vmatpush1.bf16.msra.mxu0 %v493
        %518 = vmatprep.subr.bf16.mxu0 0
        %519 = vmatpush1.bf16.msra.mxu0 0
        %520 = vmatprep.subr.bf16.mxu0 0
        %521 = vmatpush1.bf16.msra.mxu0 0
        %522 = vmatprep.subr.bf16.mxu0 0
        %523 = vmatpush1.bf16.msra.mxu0 0
        %524 = vmatprep.subr.bf16.mxu0 0
        %525 = vmatpush1.bf16.msra.mxu0 0
        %526 = vmatprep.subr.bf16.mxu0 0
        %527 = vmatpush1.bf16.msra.mxu0 0
        %528 = vmatprep.subr.bf16.mxu0 0
        %529 = vmatpush1.bf16.msra.mxu0 0
        %530 = vmatprep.subr.bf16.mxu0 0
        %531 = vmatpush1.bf16.msra.mxu0 0
        %532 = vmatprep.subr.bf16.mxu0 0
        %533 = vmatpush1.bf16.msra.mxu0 0
        %534 = vmatprep.mubr.bf16.mxu0 0
        %535 = vmatmul.mubr.bf16.gmra.mrb[0].mxu0 %v433
        %v536 = vpop.f32.mrb[0].mxu0
        %v537 = vadd.f32 %v453, %v536
        %v538 = vpop.f32.mrb[0].mxu0
        %v539 = vpop.f32.mrb[0].mxu0
        %v540 = vadd.f32 %v453, %v539
        %v541 = vpop.f32.mrb[0].mxu0
        %542 = vdwg.mxu0
        %vm543 = vcmask 31744
        %544 = vst.msk [vmem:[%s254] sm:$0xff] %vm543, %v537
        %545 = vst.msk [vmem:[%s254 + $0x8] sm:$0xff] %vm543, %v540
        %s546 = smul.u32 2, %s18
        %p547 = scmp.lt.s32.totalorder %s546, 3
        %s548 = scalar_select %p547, %s546, 3
        %s549 = smul.addr %s548, 8
        %s550 = scalar_lea.vmem %s5, %s549
        // Predicated region
        $region49: #{qnet_forward.1} parent=39 // pred_check
          %p551 = pneg %p146
        $region50: #{qnet_forward.1} parent=39 // pred_check_branch
          %553 = sbr.rel (%p551) target = $region52
        $region51: #{qnet_forward.1} parent=39 // pred_region
          %s554 = smul.u32 2, %s18
        $region52: #{qnet_forward.1} parent=39 // pred_fallthru
          _
      $region40: #{qnet_forward.1} parent=5 // pred_fallthru
        _
      %p555 = scmp.le.s32.totalorder 2, %s13
      // Predicated region
      $region53: #{qnet_forward.1} parent=5 // pred_check
        %p556 = pneg %p555
      $region54: #{qnet_forward.1} parent=5 // pred_check_branch
        %558 = sbr.rel (%p556) target = $region56
      $region55: #{qnet_forward.1} parent=5 // pred_region
        %s559 = ssub.s32 %s13, 2
        // Predicated region
        $region57: #{qnet_forward.1} parent=55 // pred_check
          %p560 = pneg %p152
        $region58: #{qnet_forward.1} parent=55 // pred_check_branch
          %562 = sbr.rel (%p560) target = $region60
        $region59: #{qnet_forward.1} parent=55 // pred_region
          %s563 = smul.u32 2, %s19
          %p564 = scmp.lt.s32.totalorder %s563, 3
          %s565 = scalar_select %p564, %s563, 3
          %s566 = smul.addr %s565, 8
          %s567 = scalar_lea.vmem %s5, %s566
        $region60: #{qnet_forward.1} parent=55 // pred_fallthru
          _
      $region56: #{qnet_forward.1} parent=5 // pred_fallthru
        _
    $region6: #{qnet_forward.1} parent=1 // loop_footer
      %s17 = sadd.s32 1, %s13
    $region7: #{qnet_forward.1} parent=1 // loop_footer_branch
      %12 = sbr.rel target = $region3
    $region8: #{qnet_forward.1} parent=1 // loop_exit
      _
    %568 = vsyncpa [#allocation3], 1
    %s569 = scalar_lea.sflag [#allocation3], 1
    %570 = vsyncpa %s569, 1
    %571 = vsyncpa [#allocation5], 1

</llo_original>
